<compile_context>
chip_gen: v5e
topology: v5e:2x2
jax: 0.10.0
libtpu: 0.0.40
codegen_flags: <defaults>
</compile_context>

<pallas_src>
import math

import jax
import jax.numpy as jnp
from jax.experimental import pallas as pl
from jax.experimental.pallas import tpu as pltpu


def _token_embed_matmul_kernel(x_ref, w_ref, o_ref):
    # x_ref: (tm, 3*c_in) im2col rows   w_ref: (3*c_in, tn)   o_ref: (tm, tn)
    o_ref[...] = jnp.dot(
        x_ref[...], w_ref[...], preferred_element_type=jnp.float32
    ).astype(o_ref.dtype)


def _choose_tn(d_model):
    # Tile d_model only when it is large and 128-aligned; otherwise use the full
    # extent (a block equal to the full array dim always satisfies (8,128)).
    if d_model % 128 != 0 or d_model <= 1024:
        return d_model
    for tn in (1024, 768, 512, 384, 256, 128):
        if d_model % tn == 0:
            return tn
    return d_model


def _choose_tm(total_rows, tn, in_width, in_bytes, out_bytes, target_rows,
               vmem_block_budget=24 << 20):
    """Pick rows-per-step: 8-aligned, VMEM-budgeted, >=2 grid steps if possible."""
    if total_rows <= 8:
        return total_rows  # single full-extent block (tiny problem)
    per_row = 2 * (in_width * in_bytes + tn * out_bytes)   # double-buffered in+out
    rows_cap = max(8, vmem_block_budget // max(per_row, 1))
    tm = min(target_rows, rows_cap, total_rows)
    tm = max(8, (tm // 8) * 8)
    # Guarantee >= 2 row steps so v7x's two TensorCores both get work.
    if (total_rows + tm - 1) // tm < 2:
        tm = max(8, (((total_rows + 1) // 2) // 8) * 8)
    return tm


def token_embedding(x, weight, *, target_rows=2048,
                    compute_dtype=None, out_dtype=None):
    """x: (B, L, c_in).  weight: (d_model, c_in, 3) in PyTorch Conv1d layout."""
    B, L, c_in = x.shape
    d_model = weight.shape[0]
    compute_dtype = compute_dtype if compute_dtype is not None else x.dtype
    out_dtype = out_dtype if out_dtype is not None else x.dtype

    # Fold the 3 conv taps into a single (3*c_in, d_model) RHS:
    #   row k*c_in + i  ==  weight[:, i, k]
    w_folded = (jnp.transpose(weight, (2, 1, 0))
                .reshape(3 * c_in, d_model)
                .astype(compute_dtype))

    # im2col in the wrapper (XLA, one-time): circular halo pad + 3-tap concat.
    x_pad = jnp.concatenate([x[:, -1:, :], x, x[:, :1, :]], axis=1)  # (B, L+2, C)
    x_cat = jnp.concatenate(
        [x_pad[:, 0:L, :], x_pad[:, 1:L + 1, :], x_pad[:, 2:L + 2, :]],
        axis=-1)                                                     # (B, L, 3C)
    x2d = x_cat.reshape(B * L, 3 * c_in).astype(compute_dtype)       # (B*L, 3C)

    total_rows = B * L
    tn = _choose_tn(d_model)
    in_bytes = jnp.dtype(compute_dtype).itemsize
    out_bytes = jnp.dtype(out_dtype).itemsize
    tm = _choose_tm(total_rows, tn, 3 * c_in, in_bytes, out_bytes, target_rows)

    num_row_blocks = (total_rows + tm - 1) // tm
    padded_rows = num_row_blocks * tm
    if padded_rows != total_rows:
        # Zero-pad rows so every output block is full and 8-aligned (unmasked vst).
        x2d = jnp.pad(x2d, ((0, padded_rows - total_rows), (0, 0)))

    num_n_blocks = d_model // tn
    grid = (num_n_blocks, num_row_blocks)   # n outer (weight tile changes rarely)

    # Explicit VMEM budget: double-buffered in/out blocks + weight tile + headroom.
    vmem_limit = (2 * tm * 3 * c_in * in_bytes
                  + 2 * tm * tn * out_bytes
                  + 2 * 3 * c_in * tn * in_bytes
                  + (2 << 20))
    vmem_limit = int(min(max(vmem_limit, 4 << 20), 100 << 20))

    out2d = pl.pallas_call(
        _token_embed_matmul_kernel,
        out_shape=jax.ShapeDtypeStruct((padded_rows, d_model), out_dtype),
        grid_spec=pltpu.PrefetchScalarGridSpec(
            num_scalar_prefetch=0,
            grid=grid,
            in_specs=[
                pl.BlockSpec((tm, 3 * c_in), lambda n, r: (r, 0)),
                pl.BlockSpec((3 * c_in, tn), lambda n, r: (0, n)),
            ],
            out_specs=pl.BlockSpec((tm, tn), lambda n, r: (r, n)),
        ),
        compiler_params=pltpu.CompilerParams(
            dimension_semantics=("parallel", "parallel"),
            vmem_limit_bytes=vmem_limit),
    )(x2d, w_folded)

    # TODO(synk): on v5e, optionally sweep pl.Buffered(3) on in/out specs once
    # tiles are enlarged (lowest HBM BW generation, 128 MiB VMEM headroom).
    return out2d[:total_rows].reshape(B, L, d_model)


def _reference(x, weight):
    # Pure-JAX reference of the PyTorch forward (circular pad + conv1d, NCL layout).
    x_ncl = jnp.transpose(x, (0, 2, 1))                                  # (B, c_in, L)
    x_p = jnp.concatenate([x_ncl[:, :, -1:], x_ncl, x_ncl[:, :, :1]], axis=-1)
    y = jax.lax.conv_general_dilated(
        x_p, weight, window_strides=(1,), padding="VALID",
        dimension_numbers=("NCH", "OIH", "NCH"))
    return jnp.transpose(y, (0, 2, 1))                                   # (B, L, d_model)


if __name__ == "__main__":
    B, L, c_in, d_model = 2, 8, 4, 32

    key = jax.random.PRNGKey(0)
    kx, kw = jax.random.split(key)

    x = jax.random.normal(kx, (B, L, c_in), dtype=jnp.float32)

    # Deterministic kaiming_normal_(mode='fan_in', nonlinearity='leaky_relu') for a
    # Conv1d weight of shape (d_model, c_in, 3): fan_in = c_in * 3.
    fan_in = c_in * 3
    gain = math.sqrt(2.0 / (1.0 + 0.01 ** 2))
    std = gain / math.sqrt(fan_in)
    weight = std * jax.random.normal(kw, (d_model, c_in, 3), dtype=jnp.float32)

    out = token_embedding(x, weight)
    out = jax.block_until_ready(out)

    ref = _reference(x, weight)
    assert out.shape == (B, L, d_model)
    assert jnp.allclose(out, ref, atol=1e-4, rtol=1e-4), "mismatch vs reference"

    print("KERNEL_OK")
</pallas_src>

<mosaic_0001>
module attributes {stable_mosaic.version = 11 : i64} {
  func.func @_token_embed_matmul_kernel(%arg0: i32, %arg1: i32, %arg2: memref<8x12xf32, #tpu.memory_space<vmem>>, %arg3: memref<12x32xf32, #tpu.memory_space<vmem>>, %arg4: memref<8x32xf32, #tpu.memory_space<vmem>>) attributes {dimension_semantics = [#tpu.dimension_semantics<parallel>, #tpu.dimension_semantics<parallel>], iteration_bounds = array<i64: 1, 2>, scalar_prefetch = 0 : i64, scratch_operands = 0 : i64, tpu.core_type = #tpu.core_type<tc>, window_params = [{transform_indices = @transform_0, window_bounds = array<i64: 8, 12>}, {transform_indices = @transform_1, window_bounds = array<i64: 12, 32>}, {transform_indices = @transform_2, window_bounds = array<i64: 8, 32>}]} {
    %c0 = arith.constant 0 : index
    %c0_0 = arith.constant 0 : index
    %0 = vector.load %arg2[%c0, %c0_0] : memref<8x12xf32, #tpu.memory_space<vmem>>, vector<8x12xf32>
    %c0_1 = arith.constant 0 : index
    %c0_2 = arith.constant 0 : index
    %1 = vector.load %arg3[%c0_1, %c0_2] : memref<12x32xf32, #tpu.memory_space<vmem>>, vector<12x32xf32>
    %cst = arith.constant dense<0.000000e+00> : vector<8x32xf32>
    %2 = tpu.matmul %0, %1, %cst {dimension_numbers = #tpu.dot_dimension_numbers<[1], [0], [0], [1], [0, 0, 1, 1], [], []>} : vector<8x12xf32>, vector<12x32xf32>, vector<8x32xf32> -> vector<8x32xf32>
    %c0_3 = arith.constant 0 : index
    %c0_4 = arith.constant 0 : index
    %3 = vector.load %arg4[%c0_3, %c0_4] : memref<8x32xf32, #tpu.memory_space<vmem>>, vector<8x32xf32>
    tpu.vector_store %arg4[%c0_3, %c0_4], %2 {strides = array<i32>} : memref<8x32xf32, #tpu.memory_space<vmem>>, vector<8x32xf32>,
    return
  }
  func.func @transform_0(%arg0: i32, %arg1: i32) -> (i32, i32) {
    %c0_i32 = arith.constant 0 : i32
    %c0_i32_0 = arith.constant 0 : i32
    return %arg1, %c0_i32 : i32, i32
  }
  func.func @transform_1(%arg0: i32, %arg1: i32) -> (i32, i32) {
    %c0_i32 = arith.constant 0 : i32
    %c0_i32_0 = arith.constant 0 : i32
    return %c0_i32, %arg0 : i32, i32
  }
  func.func @transform_2(%arg0: i32, %arg1: i32) -> (i32, i32) {
    %c0_i32 = arith.constant 0 : i32
    return %arg1, %arg0 : i32, i32
  }
}

</mosaic_0001>

<llo_original>
// kernel: tpu_custom_call.1
$region0: #{tpu_custom_call.1}
  #allocation0 [shape = 'u32[]', space=smem, size = 0x4, offset = 0x4, fixed_abs, tag = 'smem constant byte address 0x4 - core index']
  #allocation1 [shape = 'u32[72,128]{1,0:T(1,128)}', space=vmem, size = 0x9000, scoped, tag = 'internal scratch']
  %s0 = inlined_call_operand.hbm [shape: f32[16,12], index: 0, kind: input, shape index: {}]
  %s1 = inlined_call_operand.hbm [shape: f32[12,32], index: 1, kind: input, shape index: {}]
  %s2 = inlined_call_operand.hbm [shape: f32[16,32], index: 2, kind: output, shape index: {}]
  %s3 = sld [smem:[#allocation0]]
  $region49: #{tpu_custom_call.1} parent=0
    _
  %s5 = ssub.s32 1, %s3
  %s6 = scalar_select 0, %s5, %s3
  $region1: #{tpu_custom_call.1} parent=0
    #allocation2 [shape = 'u8[8192]{0}', space=vmem, size = 0x2000, scoped, tag = 'input window, operand 0']
    #allocation3 [shape = 's32[2]{0}', space=sflag, size = 0x8, scoped, tag = 'scoped memory for tpu_custom_call.1']
    #allocation4 [shape = 's32[2]{0}', space=sflag, size = 0x8, scoped, tag = 'scoped memory for tpu_custom_call.1']
    #allocation5 [shape = 'u8[8192]{0}', space=vmem, size = 0x2000, scoped, tag = 'input window, operand 1, single buffered']
    #allocation6 [shape = 's32[1]{0}', space=sflag, size = 0x4, scoped, tag = 'scoped memory for tpu_custom_call.1']
    #allocation7 [shape = 'u8[8192]{0}', space=vmem, size = 0x2000, scoped, tag = 'output window, operand 0']
    %7 = vsyncpa [#allocation3], 0
    %s8 = scalar_lea.sflag [#allocation3], 1
    %9 = vsyncpa %s8, 0
    %10 = vsyncpa [#allocation6], 0
    %11 = vsyncpa [#allocation4], 0
    %s12 = scalar_lea.sflag [#allocation4], 1
    %13 = vsyncpa %s12, 0
    loop: start=0, step=1, limit=4
    $region2: #{tpu_custom_call.1} parent=1 // loop_pre_header
      _
    $region3: #{tpu_custom_call.1} parent=1 // loop_header
      %s15 = sphi 0, %s19
      %p16 = scmp.ge.s32.totalorder %s15, 4
      %s22 = sphi 0, %s34
      %s23 = sphi 0, %s30
      %s24 = sphi 0, %s22
      %s25 = sphi 0, %s23
      %s26 = sphi 0, %s24
      %s27 = sphi 0, %s25
      %s37 = sphi 0, %s39
      %s40 = sphi 0, %s37
      %s41 = sphi 0, %s40
      %s57 = sphi 0, %s41
      %s63 = sphi 0, %s65
      %s66 = sphi 0, %s63
      %s67 = sphi 0, %s66
      %s83 = sphi 0, %s67
      %s91 = sphi 0, %s93
      %s94 = sphi 0, %s91
      %s95 = sphi 0, %s94
      %s111 = sphi 0, %s95
    $region4: #{tpu_custom_call.1} parent=1 // loop_header_branch
      %18 = sbr.rel (%p16) target = $region8
    $region5: #{tpu_custom_call.1} parent=1 // loop_body
      %s20 = ssub.s32 %s15, 1
      %s21 = ssub.s32 %s15, 2
      %s28 = sadd.s32 1, %s23
      %p29 = scmp.ge.s32.totalorder %s28, 2
      %s30 = scalar_select %p29, 0, %s28
      %s31 = sadd.s32 1, %s22
      %s32 = scalar_select %p29, %s31, %s22
      %p33 = scmp.ge.s32.totalorder %s32, 1
      %s34 = scalar_select %p33, 0, %s32
      %s35 = ssub.s32 %s23, %s30
      %p36 = scmp.eq.s32.totalorder %s35, 0
      %s38 = sadd.s32 %s37, 1
      %s39 = scalar_select %p36, %s37, %s38
      %p42 = pneg %p36
      %p43 = scmp.eq.s32.totalorder %s15, 1
      %p44 = por %p42, %p43
      %p45 = scmp.ne.s32.totalorder %s37, %s40
      %p46 = scmp.eq.s32.totalorder %s15, 0
      %p47 = por %p45, %p46
      %p48 = scmp.ne.s32.totalorder %s37, %s40
      %p49 = scmp.eq.s32.totalorder %s20, 1
      %p50 = por %p48, %p49
      %p51 = scmp.ne.s32.totalorder %s40, %s41
      %p52 = scmp.eq.s32.totalorder %s20, 0
      %p53 = por %p51, %p52
      %p54 = scmp.ne.s32.totalorder %s40, %s41
      %p55 = scmp.eq.s32.totalorder %s21, 1
      %p56 = por %p54, %p55
      %p58 = scmp.ne.s32.totalorder %s41, %s57
      %p59 = scmp.eq.s32.totalorder %s21, 0
      %p60 = por %p58, %p59
      %s61 = ssub.s32 %s22, %s34
      %p62 = scmp.eq.s32.totalorder %s61, 0
      %s64 = sadd.s32 %s63, 1
      %s65 = scalar_select %p62, %s63, %s64
      %p68 = pneg %p62
      %p69 = scmp.eq.s32.totalorder %s15, 1
      %p70 = por %p68, %p69
      %p71 = scmp.ne.s32.totalorder %s63, %s66
      %p72 = scmp.eq.s32.totalorder %s15, 0
      %p73 = por %p71, %p72
      %p74 = scmp.ne.s32.totalorder %s63, %s66
      %p75 = scmp.eq.s32.totalorder %s20, 1
      %p76 = por %p74, %p75
      %p77 = scmp.ne.s32.totalorder %s66, %s67
      %p78 = scmp.eq.s32.totalorder %s20, 0
      %p79 = por %p77, %p78
      %p80 = scmp.ne.s32.totalorder %s66, %s67
      %p81 = scmp.eq.s32.totalorder %s21, 1
      %p82 = por %p80, %p81
      %p84 = scmp.ne.s32.totalorder %s67, %s83
      %p85 = scmp.eq.s32.totalorder %s21, 0
      %p86 = por %p84, %p85
      %s87 = ssub.s32 %s23, %s30
      %s88 = ssub.s32 %s22, %s34
      %s89 = sor.u32 %s87, %s88
      %p90 = scmp.eq.s32.totalorder %s89, 0
      %s92 = sadd.s32 %s91, 1
      %s93 = scalar_select %p90, %s91, %s92
      %p96 = pneg %p90
      %p97 = scmp.eq.s32.totalorder %s15, 1
      %p98 = por %p96, %p97
      %p99 = scmp.ne.s32.totalorder %s91, %s94
      %p100 = scmp.eq.s32.totalorder %s15, 0
      %p101 = por %p99, %p100
      %p102 = scmp.ne.s32.totalorder %s91, %s94
      %p103 = scmp.eq.s32.totalorder %s20, 1
      %p104 = por %p102, %p103
      %p105 = scmp.ne.s32.totalorder %s94, %s95
      %p106 = scmp.eq.s32.totalorder %s20, 0
      %p107 = por %p105, %p106
      %p108 = scmp.ne.s32.totalorder %s94, %s95
      %p109 = scmp.eq.s32.totalorder %s21, 1
      %p110 = por %p108, %p109
      %p112 = scmp.ne.s32.totalorder %s95, %s111
      %p113 = scmp.eq.s32.totalorder %s21, 0
      %p114 = por %p112, %p113
      %p115 = scmp.le.s32.totalorder 1, %s15
      %p116 = scmp.lt.s32.totalorder %s15, 3
      %p117 = pnand %p115, %p116
      %p118 = pneg %p117
      // Predicated region
      $region9: #{tpu_custom_call.1} parent=5 // pred_check
        _
      $region10: #{tpu_custom_call.1} parent=5 // pred_check_branch
        %120 = sbr.rel (%p117) target = $region12
      $region11: #{tpu_custom_call.1} parent=5 // pred_region
        %s121 = ssub.s32 %s15, 1
        // Predicated region
        $region13: #{tpu_custom_call.1} parent=11 // pred_check
          %p122 = pneg %p79
        $region14: #{tpu_custom_call.1} parent=11 // pred_check_branch
          %124 = sbr.rel (%p122) target = $region16
        $region15: #{tpu_custom_call.1} parent=11 // pred_region
          %126 = vsyncadd [#allocation6], 0
          %s127 = smul.addr %s24, 8
          %s128 = scalar_lea.hbm %s1, %s127
          %s129 = sshll.u32 %s128, 4
          %s130 = int_to_ptr.hbm [resolvable:$true] %s129
          %s131 = sshll.u32 [#allocation5], 4
          %s132 = int_to_ptr.vmem [resolvable:$true] %s131
          %137 = dma.hbm_to_vmem [thread:$0]  %s130, 256, %s132, [#allocation6], 128, 128, 8
        $region16: #{tpu_custom_call.1} parent=11 // pred_fallthru
          _
      $region12: #{tpu_custom_call.1} parent=5 // pred_fallthru
        _
      %p138 = scmp.lt.s32.totalorder %s15, 2
      // Predicated region
      $region17: #{tpu_custom_call.1} parent=5 // pred_check
        %p139 = pneg %p138
      $region18: #{tpu_custom_call.1} parent=5 // pred_check_branch
        %141 = sbr.rel (%p139) target = $region20
      $region19: #{tpu_custom_call.1} parent=5 // pred_region
        // Predicated region
        $region21: #{tpu_custom_call.1} parent=19 // pred_check
          %p142 = pneg %p47
        $region22: #{tpu_custom_call.1} parent=19 // pred_check_branch
          %144 = sbr.rel (%p142) target = $region24
        $region23: #{tpu_custom_call.1} parent=19 // pred_region
          %s145 = sand.u32 %s37, 1
          %s146 = scalar_lea.sflag [#allocation3], %s145
          %s147 = sand.u32 %s37, 1
          %s148 = smul.addr %s147, 8
          %s149 = scalar_lea.vmem [#allocation2], %s148
          %151 = vsyncadd %s146, 0
          %s152 = smul.addr %s23, 8
          %s153 = scalar_lea.hbm %s0, %s152
          %s155 = sshll.u32 %s153, 4
          %s156 = int_to_ptr.hbm [resolvable:$true] %s155
          %s157 = sshll.u32 %s149, 4
          %s158 = int_to_ptr.vmem [resolvable:$true] %s157
          %160 = dma.hbm_to_vmem [thread:$0]  %s156, 128, %s158, %s146
        $region24: #{tpu_custom_call.1} parent=19 // pred_fallthru
          _
      $region20: #{tpu_custom_call.1} parent=5 // pred_fallthru
        _
      %p161 = scmp.le.s32.totalorder 1, %s15
      %p162 = scmp.lt.s32.totalorder %s15, 3
      %p163 = pnand %p161, %p162
      %p164 = pneg %p163
      // Predicated region
      $region25: #{tpu_custom_call.1} parent=5 // pred_check
        _
      $region26: #{tpu_custom_call.1} parent=5 // pred_check_branch
        %166 = sbr.rel (%p163) target = $region28
      $region27: #{tpu_custom_call.1} parent=5 // pred_region
        %s167 = ssub.s32 %s15, 1
        %s168 = sand.u32 %s40, 1
        %s169 = scalar_lea.sflag [#allocation3], %s168
        %s170 = sand.u32 %s40, 1
        %s171 = smul.addr %s170, 8
        %s172 = scalar_lea.vmem [#allocation2], %s171
        // Predicated region
        $region29: #{tpu_custom_call.1} parent=27 // pred_check
          %p173 = pneg %p53
        $region30: #{tpu_custom_call.1} parent=27 // pred_check_branch
          %175 = sbr.rel (%p173) target = $region32
        $region31: #{tpu_custom_call.1} parent=27 // pred_region
          %177 = dma.done %s169, 128
        $region32: #{tpu_custom_call.1} parent=27 // pred_fallthru
          _
        // Predicated region
        $region33: #{tpu_custom_call.1} parent=27 // pred_check
          %p178 = pneg %p79
        $region34: #{tpu_custom_call.1} parent=27 // pred_check_branch
          %180 = sbr.rel (%p178) target = $region36
        $region35: #{tpu_custom_call.1} parent=27 // pred_region
          %182 = dma.done [#allocation6], 256
        $region36: #{tpu_custom_call.1} parent=27 // pred_fallthru
          _
        %s183 = sand.u32 %s40, 1
        %s184 = scalar_lea.sflag [#allocation3], %s183
        %s185 = sand.u32 %s40, 1
        %s186 = smul.addr %s185, 8
        %s187 = scalar_lea.vmem [#allocation2], %s186
        %p188 = pneg %p53
        %p189 = pneg %p50
        %p190 = pneg %p79
        %p191 = pneg %p76
        %p192 = pneg %p107
        %p193 = pneg %p104
        %s194 = sand.u32 %s94, 1
        %s195 = scalar_lea.sflag [#allocation4], %s194
        %s196 = sand.u32 %s94, 1
        %s197 = smul.addr %s196, 8
        %s198 = scalar_lea.vmem [#allocation7], %s197
        %v199 = vld [vmem:[%s172] sm:$0xff]
        %v200 = vld [vmem:[#allocation5] sm:$0xff]
        %v201 = vld [vmem:[#allocation5 + $0x8] sm:$0xf]
        %vm202 = vcmask 97280
        %v204 = vsel %vm202, %v199, 0
        %vm206 = vcmask 1043456
        %v208 = vsel %vm206, %v201, 0
        %210 = vmatpush.msra.mxu0 0.0
        %211 = vmatpush.msra.mxu0 0.0
        %212 = vmatpush.msra.mxu0 0.0
        %213 = vmatpush.msra.mxu0 0.0
        %214 = vmatpush.msra.mxu0 0.0
        %215 = vmatpush.msra.mxu0 0.0
        %216 = vmatpush.msra.mxu0 0.0
        %217 = vmatpush.msra.mxu0 0.0
        %218 = vmatpush.msra.mxu0 0.0
        %219 = vmatpush.msra.mxu0 0.0
        %220 = vmatpush.msra.mxu0 0.0
        %221 = vmatpush.msra.mxu0 0.0
        %222 = vmatpush.msra.mxu0 0.0
        %223 = vmatpush.msra.mxu0 0.0
        %224 = vmatpush.msra.mxu0 %v208
        %225 = vmatpush.msra.mxu0 %v200
        %226 = vmatmul.f32.gmra.mxu0 %v204
        %v227 = vpop.f32.mrf.mxu0
        %v228 = vadd.f32 0.0, %v227
        %229 = vdwg.mxu0
        %vm230 = vcmask 261120
        %231 = vst.msk [vmem:[%s198] sm:$0xff] %vm230, %v228
        %s232 = sand.u32 %s94, 1
        %s233 = scalar_lea.sflag [#allocation4], %s232
        %s234 = sand.u32 %s94, 1
        %s235 = smul.addr %s234, 8
        %s236 = scalar_lea.vmem [#allocation7], %s235
        // Predicated region
        $region37: #{tpu_custom_call.1} parent=27 // pred_check
          %p237 = pneg %p104
        $region38: #{tpu_custom_call.1} parent=27 // pred_check_branch
          %239 = sbr.rel (%p237) target = $region40
        $region39: #{tpu_custom_call.1} parent=27 // pred_region
          %241 = vsyncadd %s233, 0
          %s242 = sadd.s32 %s24, %s25
          %s243 = smul.addr %s242, 8
          %s244 = scalar_lea.hbm %s2, %s243
          %s246 = sshll.u32 %s236, 4
          %s247 = int_to_ptr.vmem [resolvable:$true] %s246
          %s248 = sshll.u32 %s244, 4
          %s249 = int_to_ptr.hbm [resolvable:$true] %s248
          %251 = dma.vmem_to_hbm [thread:$0]  %s247, 128, %s249, %s233
        $region40: #{tpu_custom_call.1} parent=27 // pred_fallthru
          _
      $region28: #{tpu_custom_call.1} parent=5 // pred_fallthru
        _
      %p252 = scmp.le.s32.totalorder 2, %s15
      // Predicated region
      $region41: #{tpu_custom_call.1} parent=5 // pred_check
        %p253 = pneg %p252
      $region42: #{tpu_custom_call.1} parent=5 // pred_check_branch
        %255 = sbr.rel (%p253) target = $region44
      $region43: #{tpu_custom_call.1} parent=5 // pred_region
        %s256 = ssub.s32 %s15, 2
        // Predicated region
        $region45: #{tpu_custom_call.1} parent=43 // pred_check
          %p257 = pneg %p110
        $region46: #{tpu_custom_call.1} parent=43 // pred_check_branch
          %259 = sbr.rel (%p257) target = $region48
        $region47: #{tpu_custom_call.1} parent=43 // pred_region
          %s260 = sand.u32 %s95, 1
          %s261 = scalar_lea.sflag [#allocation4], %s260
          %s262 = sand.u32 %s95, 1
          %s263 = smul.addr %s262, 8
          %s264 = scalar_lea.vmem [#allocation7], %s263
          %266 = dma.done %s261, 128
        $region48: #{tpu_custom_call.1} parent=43 // pred_fallthru
          _
      $region44: #{tpu_custom_call.1} parent=5 // pred_fallthru
        _
    $region6: #{tpu_custom_call.1} parent=1 // loop_footer
      %s19 = sadd.s32 1, %s15
    $region7: #{tpu_custom_call.1} parent=1 // loop_footer_branch
      %14 = sbr.rel target = $region3
    $region8: #{tpu_custom_call.1} parent=1 // loop_exit
      _
    %267 = vsyncpa [#allocation3], 1
    %s268 = scalar_lea.sflag [#allocation3], 1
    %269 = vsyncpa %s268, 1
    %270 = vsyncpa [#allocation6], 1
    %271 = vsyncpa [#allocation4], 1
    %s272 = scalar_lea.sflag [#allocation4], 1
    %273 = vsyncpa %s272, 1

</llo_original>
